<compile_context>
chip_gen: v6e
topology: v6e:2x2x1
jax: 0.10.0
libtpu: 0.0.40
codegen_flags: <defaults>
</compile_context>

<pallas_src>
import jax
import jax.numpy as jnp
from jax.experimental import pallas as pl
from jax.experimental.pallas import tpu as pltpu


def _round_up(x, m):
    return ((x + m - 1) // m) * m


def _pad2(a, rows, cols, dtype):
    """Cast to dtype and zero-pad a 2D array up to (rows, cols)."""
    a = a.astype(dtype)
    pr, pc = rows - a.shape[0], cols - a.shape[1]
    if pr == 0 and pc == 0:
        return a
    return jnp.pad(a, ((0, pr), (0, pc)))


def _sigmoid_eup(v):
    # sigmoid(x) == 0.5 * tanh(0.5 * x) + 0.5 : tanh runs on the EUP slot, the
    # remaining work is a single VPU FMA (avoids a true f32 divide on the VALU).
    return 0.5 * jnp.tanh(0.5 * v) + 0.5


def autoencoder_kernel(x_ref,
                       we1_ref, be1_ref,   # Encoder.flinear: embed -> E
                       we2_ref, be2_ref,   # Encoder.slinear: E     -> C
                       wd1_ref, bd1_ref,   # Decoder.flinear: C     -> C
                       wd2_ref, bd2_ref,   # Decoder.slinear: C     -> embed
                       o_ref):
    cdt = we1_ref.dtype                    # MXU input (compute) dtype
    x = x_ref[...].astype(cdt)
    # All dots accumulate in f32 on the MXU; bias add + sigmoid stay in f32.
    h = _sigmoid_eup(
        jnp.dot(x, we1_ref[...], preferred_element_type=jnp.float32) + be1_ref[...])
    z = _sigmoid_eup(
        jnp.dot(h.astype(cdt), we2_ref[...], preferred_element_type=jnp.float32)
        + be2_ref[...])
    h2 = _sigmoid_eup(
        jnp.dot(z.astype(cdt), wd1_ref[...], preferred_element_type=jnp.float32)
        + bd1_ref[...])
    out = _sigmoid_eup(
        jnp.dot(h2.astype(cdt), wd2_ref[...], preferred_element_type=jnp.float32)
        + bd2_ref[...])
    o_ref[...] = out.astype(o_ref.dtype)


def _vmem_budget_bytes():
    """~85% of this generation's physical VMEM (headroom for Mosaic scratch)."""
    cap = 128 * 1024 * 1024                       # v5e / v6e physical default
    try:
        info = pltpu.get_tpu_info()
        cap = int(getattr(info, "vmem_capacity_bytes", cap))
    except Exception:
        pass
    return int(cap * 0.85)


def autoencoder_forward(x, params, *, block_batch=1024, compute_dtype=None,
                        out_dtype=None, single_buffer_weights=True):
    """x: (batch, embed). params: dict of (in, out) weights and (1, out) biases.

    compute_dtype (e.g. jnp.bfloat16) controls the MXU input dtype of x and all
    weights (accumulation stays f32); out_dtype controls the stored output dtype.
    """
    batch, embed = x.shape
    encoding = params["we2"].shape[1]
    out_dtype = jnp.dtype(out_dtype) if out_dtype is not None else jnp.dtype(x.dtype)
    cdt = jnp.dtype(compute_dtype) if compute_dtype is not None else jnp.dtype(x.dtype)

    # Lane-dense hidden widths (weights only; x / out keep their true width).
    E = _round_up(embed, 128)      # encoder hidden width
    C = _round_up(encoding, 128)   # code / decoder hidden width

    # Batch tiling: big tiles to amortize per-step overhead, clamped to the
    # batch, and >= 2 grid steps when possible so v7x can use both TensorCores.
    PB8 = _round_up(batch, 8)
    TB = min(_round_up(block_batch, 8), PB8)
    if PB8 // TB < 2 and PB8 >= 16:
        TB = _round_up((PB8 + 1) // 2, 8)
    PB = _round_up(batch, TB)
    grid = (PB // TB,)

    # x: pad batch rows only (no feature padding, no wrapper-side dtype copy).
    xp = x if PB == batch else jnp.pad(x, ((0, PB - batch), (0, 0)))

    # Weights stored as (in, out) == PyTorch weight.T; zero-pad hidden dims only.
    # Zero padding is exact: padded weight rows are zero, so sigmoid(0)=0.5 in
    # padded activation columns never contributes to a real output column.
    we1 = _pad2(params["we1"], embed, E, cdt)
    we2 = _pad2(params["we2"], E, C, cdt)
    wd1 = _pad2(params["wd1"], C, C, cdt)
    wd2 = _pad2(params["wd2"], C, embed, cdt)
    be1 = _pad2(params["be1"], 1, E, jnp.float32)
    be2 = _pad2(params["be2"], 1, C, jnp.float32)
    bd1 = _pad2(params["bd1"], 1, C, jnp.float32)
    bd2 = _pad2(params["bd2"], 1, embed, jnp.float32)

    # Single (not double-counted) VMEM estimate, capped at a generation-aware budget.
    isz = cdt.itemsize
    wbuf = 1 if single_buffer_weights else 2
    weight_bytes = (embed * E + E * C + C * C + C * embed) * isz
    bias_bytes = (E + 2 * C + embed) * 4
    io_bytes = 2 * TB * embed * (jnp.dtype(x.dtype).itemsize + out_dtype.itemsize)
    work_bytes = 4 * TB * max(E, C) * (4 + isz)          # f32 + cdt activations
    needed = wbuf * (weight_bytes + bias_bytes) + io_bytes + work_bytes + (4 << 20)
    vmem_limit = int(min(max(needed, 32 << 20), _vmem_budget_bytes()))

    tile_map = lambda i: (i, 0)
    x_spec = pl.BlockSpec((TB, embed), tile_map)
    out_spec = pl.BlockSpec((TB, embed), tile_map)

    def _call(use_single_buffer):
        def resident(shape):
            imap = lambda i: (0,) * len(shape)
            if use_single_buffer and hasattr(pl, "Buffered"):
                try:
                    # Constant index_map => block never changes; 1 buffer suffices.
                    return pl.BlockSpec(shape, imap, pipeline_mode=pl.Buffered(1))
                except TypeError:
                    pass
            return pl.BlockSpec(shape, imap)

        in_specs = [
            x_spec,
            resident((embed, E)), resident((1, E)),
            resident((E, C)),     resident((1, C)),
            resident((C, C)),     resident((1, C)),
            resident((C, embed)), resident((1, embed)),
        ]
        return pl.pallas_call(
            autoencoder_kernel,
            out_shape=jax.ShapeDtypeStruct((PB, embed), out_dtype),
            grid=grid,
            in_specs=in_specs,
            out_specs=out_spec,
            compiler_params=pltpu.CompilerParams(
                dimension_semantics=("parallel",),
                vmem_limit_bytes=vmem_limit,
            ),
        )(xp, we1, be1, we2, be2, wd1, bd1, wd2, bd2)

    try:
        out_padded = _call(single_buffer_weights)
    except Exception:
        if not single_buffer_weights:
            raise
        out_padded = _call(False)   # fallback: default double-buffered weights

    return out_padded if PB == batch else out_padded[:batch]


def init_params(key, embed_size, encoding_size, dtype=jnp.float32):
    ks = jax.random.split(key, 8)
    scale = 0.1

    def w(k, fan_in, fan_out):
        # stored as (in, out) == PyTorch weight.T
        return (scale * jax.random.normal(k, (fan_in, fan_out))).astype(dtype)

    def b(k, fan_out):
        return (scale * jax.random.normal(k, (1, fan_out))).astype(dtype)

    return {
        # Encoder.flinear: Linear(embed, embed)
        "we1": w(ks[0], embed_size, embed_size), "be1": b(ks[1], embed_size),
        # Encoder.slinear: Linear(embed, encoding)
        "we2": w(ks[2], embed_size, encoding_size), "be2": b(ks[3], encoding_size),
        # Decoder.flinear: Linear(encoding, encoding)
        "wd1": w(ks[4], encoding_size, encoding_size), "bd1": b(ks[5], encoding_size),
        # Decoder.slinear: Linear(encoding, embed)
        "wd2": w(ks[6], encoding_size, embed_size), "bd2": b(ks[7], embed_size),
    }


def reference_forward(x, p, compute_dtype=None, out_dtype=None):
    """Pure-JAX reference mirroring the kernel's mixed-precision recipe."""
    cdt = jnp.dtype(compute_dtype) if compute_dtype is not None else jnp.dtype(x.dtype)
    odt = jnp.dtype(out_dtype) if out_dtype is not None else x.dtype

    def layer(a, w, b):
        y = jnp.dot(a.astype(cdt), p[w].astype(cdt),
                    preferred_element_type=jnp.float32) + p[b].astype(jnp.float32)
        return jax.nn.sigmoid(y)

    h = layer(x, "we1", "be1")
    z = layer(h, "we2", "be2")
    h2 = layer(z, "wd1", "bd1")
    return layer(h2, "wd2", "bd2").astype(odt)


if __name__ == "__main__":
    embed_size, encoding_size = 32, 16

    key = jax.random.PRNGKey(0)
    kx, kp, kx2 = jax.random.split(key, 3)
    params = init_params(kp, embed_size, encoding_size)

    # 1) Small batch, f32 compute: single tile, true (unpadded) feature width
    #    end-to-end for x and the output.
    x_small = jax.random.normal(kx, (8, embed_size), dtype=jnp.float32)
    out_small = jax.block_until_ready(autoencoder_forward(x_small, params))
    ref_small = reference_forward(x_small, params)
    assert out_small.shape == (8, embed_size)
    assert jnp.allclose(out_small, ref_small, atol=2e-3, rtol=2e-3), "f32 mismatch"

    # 2) Larger batch, bf16 MXU inputs + bf16 output: 2 grid steps of TB=1024
    #    (parallel batch axis usable by both TCs on v7x), VMEM-resident
    #    single-buffered weights, halved output HBM stream.
    x_big = jax.random.normal(kx2, (2048, embed_size), dtype=jnp.float32)
    out_big = jax.block_until_ready(
        autoencoder_forward(x_big, params, block_batch=1024,
                            compute_dtype=jnp.bfloat16, out_dtype=jnp.bfloat16))
    ref_big = reference_forward(x_big, params, compute_dtype=jnp.bfloat16,
                                out_dtype=jnp.bfloat16)
    assert out_big.shape == (2048, embed_size)
    assert out_big.dtype == jnp.bfloat16
    assert jnp.allclose(out_big.astype(jnp.float32), ref_big.astype(jnp.float32),
                        atol=2e-2, rtol=2e-2), "bf16 mismatch"

    print("KERNEL_OK")
</pallas_src>

<mosaic_0001>
module attributes {stable_mosaic.version = 11 : i64} {
  func.func @autoencoder_kernel(%arg0: i32, %arg1: memref<8x32xf32, #tpu.memory_space<vmem>>, %arg2: memref<32x128xf32, #tpu.memory_space<vmem>>, %arg3: memref<1x128xf32, #tpu.memory_space<vmem>>, %arg4: memref<128x128xf32, #tpu.memory_space<vmem>>, %arg5: memref<1x128xf32, #tpu.memory_space<vmem>>, %arg6: memref<128x128xf32, #tpu.memory_space<vmem>>, %arg7: memref<1x128xf32, #tpu.memory_space<vmem>>, %arg8: memref<128x32xf32, #tpu.memory_space<vmem>>, %arg9: memref<1x32xf32, #tpu.memory_space<vmem>>, %arg10: memref<8x32xf32, #tpu.memory_space<vmem>>) attributes {dimension_semantics = [#tpu.dimension_semantics<parallel>], iteration_bounds = array<i64: 1>, scalar_prefetch = 0 : i64, scratch_operands = 0 : i64, tpu.core_type = #tpu.core_type<tc>, window_params = [{transform_indices = @transform_0, window_bounds = array<i64: 8, 32>}, {pipeline_mode = #tpu.pipeline_mode<synchronous>, transform_indices = @transform_1, window_bounds = array<i64: 32, 128>}, {pipeline_mode = #tpu.pipeline_mode<synchronous>, transform_indices = @transform_2, window_bounds = array<i64: 1, 128>}, {pipeline_mode = #tpu.pipeline_mode<synchronous>, transform_indices = @transform_3, window_bounds = array<i64: 128, 128>}, {pipeline_mode = #tpu.pipeline_mode<synchronous>, transform_indices = @transform_4, window_bounds = array<i64: 1, 128>}, {pipeline_mode = #tpu.pipeline_mode<synchronous>, transform_indices = @transform_5, window_bounds = array<i64: 128, 128>}, {pipeline_mode = #tpu.pipeline_mode<synchronous>, transform_indices = @transform_6, window_bounds = array<i64: 1, 128>}, {pipeline_mode = #tpu.pipeline_mode<synchronous>, transform_indices = @transform_7, window_bounds = array<i64: 128, 32>}, {pipeline_mode = #tpu.pipeline_mode<synchronous>, transform_indices = @transform_8, window_bounds = array<i64: 1, 32>}, {transform_indices = @transform_9, window_bounds = array<i64: 8, 32>}]} {
    %c0 = arith.constant 0 : index
    %c0_0 = arith.constant 0 : index
    %0 = vector.load %arg1[%c0, %c0_0] : memref<8x32xf32, #tpu.memory_space<vmem>>, vector<8x32xf32>
    %c0_1 = arith.constant 0 : index
    %c0_2 = arith.constant 0 : index
    %1 = vector.load %arg2[%c0_1, %c0_2] : memref<32x128xf32, #tpu.memory_space<vmem>>, vector<32x128xf32>
    %cst = arith.constant dense<0.000000e+00> : vector<8x128xf32>
    %2 = tpu.matmul %0, %1, %cst {dimension_numbers = #tpu.dot_dimension_numbers<[1], [0], [0], [1], [0, 0, 1, 1], [], []>} : vector<8x32xf32>, vector<32x128xf32>, vector<8x128xf32> -> vector<8x128xf32>
    %c0_3 = arith.constant 0 : index
    %c0_4 = arith.constant 0 : index
    %3 = vector.load %arg3[%c0_3, %c0_4] : memref<1x128xf32, #tpu.memory_space<vmem>>, vector<1x128xf32>
    %4 = vector.broadcast %3 : vector<1x128xf32> to vector<8x128xf32>
    %5 = arith.addf %2, %4 : vector<8x128xf32>
    %cst_5 = arith.constant 5.000000e-01 : f32
    %6 = vector.broadcast %cst_5 : f32 to vector<8x128xf32>
    %7 = arith.mulf %6, %5 : vector<8x128xf32>
    %8 = math.tanh %7 : vector<8x128xf32>
    %cst_6 = arith.constant 5.000000e-01 : f32
    %9 = vector.broadcast %cst_6 : f32 to vector<8x128xf32>
    %10 = arith.mulf %9, %8 : vector<8x128xf32>
    %cst_7 = arith.constant 5.000000e-01 : f32
    %11 = vector.broadcast %cst_7 : f32 to vector<8x128xf32>
    %12 = arith.addf %10, %11 : vector<8x128xf32>
    %c0_8 = arith.constant 0 : index
    %c0_9 = arith.constant 0 : index
    %13 = vector.load %arg4[%c0_8, %c0_9] : memref<128x128xf32, #tpu.memory_space<vmem>>, vector<128x128xf32>
    %cst_10 = arith.constant dense<0.000000e+00> : vector<8x128xf32>
    %14 = tpu.matmul %12, %13, %cst_10 {dimension_numbers = #tpu.dot_dimension_numbers<[1], [0], [0], [1], [0, 0, 1, 1], [], []>} : vector<8x128xf32>, vector<128x128xf32>, vector<8x128xf32> -> vector<8x128xf32>
    %c0_11 = arith.constant 0 : index
    %c0_12 = arith.constant 0 : index
    %15 = vector.load %arg5[%c0_11, %c0_12] : memref<1x128xf32, #tpu.memory_space<vmem>>, vector<1x128xf32>
    %16 = vector.broadcast %15 : vector<1x128xf32> to vector<8x128xf32>
    %17 = arith.addf %14, %16 : vector<8x128xf32>
    %cst_13 = arith.constant 5.000000e-01 : f32
    %18 = vector.broadcast %cst_13 : f32 to vector<8x128xf32>
    %19 = arith.mulf %18, %17 : vector<8x128xf32>
    %20 = math.tanh %19 : vector<8x128xf32>
    %cst_14 = arith.constant 5.000000e-01 : f32
    %21 = vector.broadcast %cst_14 : f32 to vector<8x128xf32>
    %22 = arith.mulf %21, %20 : vector<8x128xf32>
    %cst_15 = arith.constant 5.000000e-01 : f32
    %23 = vector.broadcast %cst_15 : f32 to vector<8x128xf32>
    %24 = arith.addf %22, %23 : vector<8x128xf32>
    %c0_16 = arith.constant 0 : index
    %c0_17 = arith.constant 0 : index
    %25 = vector.load %arg6[%c0_16, %c0_17] : memref<128x128xf32, #tpu.memory_space<vmem>>, vector<128x128xf32>
    %cst_18 = arith.constant dense<0.000000e+00> : vector<8x128xf32>
    %26 = tpu.matmul %24, %25, %cst_18 {dimension_numbers = #tpu.dot_dimension_numbers<[1], [0], [0], [1], [0, 0, 1, 1], [], []>} : vector<8x128xf32>, vector<128x128xf32>, vector<8x128xf32> -> vector<8x128xf32>
    %c0_19 = arith.constant 0 : index
    %c0_20 = arith.constant 0 : index
    %27 = vector.load %arg7[%c0_19, %c0_20] : memref<1x128xf32, #tpu.memory_space<vmem>>, vector<1x128xf32>
    %28 = vector.broadcast %27 : vector<1x128xf32> to vector<8x128xf32>
    %29 = arith.addf %26, %28 : vector<8x128xf32>
    %cst_21 = arith.constant 5.000000e-01 : f32
    %30 = vector.broadcast %cst_21 : f32 to vector<8x128xf32>
    %31 = arith.mulf %30, %29 : vector<8x128xf32>
    %32 = math.tanh %31 : vector<8x128xf32>
    %cst_22 = arith.constant 5.000000e-01 : f32
    %33 = vector.broadcast %cst_22 : f32 to vector<8x128xf32>
    %34 = arith.mulf %33, %32 : vector<8x128xf32>
    %cst_23 = arith.constant 5.000000e-01 : f32
    %35 = vector.broadcast %cst_23 : f32 to vector<8x128xf32>
    %36 = arith.addf %34, %35 : vector<8x128xf32>
    %c0_24 = arith.constant 0 : index
    %c0_25 = arith.constant 0 : index
    %37 = vector.load %arg8[%c0_24, %c0_25] : memref<128x32xf32, #tpu.memory_space<vmem>>, vector<128x32xf32>
    %cst_26 = arith.constant dense<0.000000e+00> : vector<8x32xf32>
    %38 = tpu.matmul %36, %37, %cst_26 {dimension_numbers = #tpu.dot_dimension_numbers<[1], [0], [0], [1], [0, 0, 1, 1], [], []>} : vector<8x128xf32>, vector<128x32xf32>, vector<8x32xf32> -> vector<8x32xf32>
    %c0_27 = arith.constant 0 : index
    %c0_28 = arith.constant 0 : index
    %39 = vector.load %arg9[%c0_27, %c0_28] : memref<1x32xf32, #tpu.memory_space<vmem>>, vector<1x32xf32>
    %40 = vector.broadcast %39 : vector<1x32xf32> to vector<8x32xf32>
    %41 = arith.addf %38, %40 : vector<8x32xf32>
    %cst_29 = arith.constant 5.000000e-01 : f32
    %42 = vector.broadcast %cst_29 : f32 to vector<8x32xf32>
    %43 = arith.mulf %42, %41 : vector<8x32xf32>
    %44 = math.tanh %43 : vector<8x32xf32>
    %cst_30 = arith.constant 5.000000e-01 : f32
    %45 = vector.broadcast %cst_30 : f32 to vector<8x32xf32>
    %46 = arith.mulf %45, %44 : vector<8x32xf32>
    %cst_31 = arith.constant 5.000000e-01 : f32
    %47 = vector.broadcast %cst_31 : f32 to vector<8x32xf32>
    %48 = arith.addf %46, %47 : vector<8x32xf32>
    %c0_32 = arith.constant 0 : index
    %c0_33 = arith.constant 0 : index
    %49 = vector.load %arg10[%c0_32, %c0_33] : memref<8x32xf32, #tpu.memory_space<vmem>>, vector<8x32xf32>
    tpu.vector_store %arg10[%c0_32, %c0_33], %48 {strides = array<i32>} : memref<8x32xf32, #tpu.memory_space<vmem>>, vector<8x32xf32>,
    return
  }
  func.func @transform_0(%arg0: i32) -> (i32, i32) {
    %c0_i32 = arith.constant 0 : i32
    %c0_i32_0 = arith.constant 0 : i32
    return %arg0, %c0_i32 : i32, i32
  }
  func.func @transform_1(%arg0: i32) -> (i32, i32) {
    %c0_i32 = arith.constant 0 : i32
    %c0_i32_0 = arith.constant 0 : i32
    %c0_i32_1 = arith.constant 0 : i32
    return %c0_i32, %c0_i32_0 : i32, i32
  }
  func.func @transform_2(%arg0: i32) -> (i32, i32) {
    %c0_i32 = arith.constant 0 : i32
    %c0_i32_0 = arith.constant 0 : i32
    %c0_i32_1 = arith.constant 0 : i32
    return %c0_i32, %c0_i32_0 : i32, i32
  }
  func.func @transform_3(%arg0: i32) -> (i32, i32) {
    %c0_i32 = arith.constant 0 : i32
    %c0_i32_0 = arith.constant 0 : i32
    %c0_i32_1 = arith.constant 0 : i32
    return %c0_i32, %c0_i32_0 : i32, i32
  }
  func.func @transform_4(%arg0: i32) -> (i32, i32) {
    %c0_i32 = arith.constant 0 : i32
    %c0_i32_0 = arith.constant 0 : i32
    %c0_i32_1 = arith.constant 0 : i32
    return %c0_i32, %c0_i32_0 : i32, i32
  }
  func.func @transform_5(%arg0: i32) -> (i32, i32) {
    %c0_i32 = arith.constant 0 : i32
    %c0_i32_0 = arith.constant 0 : i32
    %c0_i32_1 = arith.constant 0 : i32
    return %c0_i32, %c0_i32_0 : i32, i32
  }
  func.func @transform_6(%arg0: i32) -> (i32, i32) {
    %c0_i32 = arith.constant 0 : i32
    %c0_i32_0 = arith.constant 0 : i32
    %c0_i32_1 = arith.constant 0 : i32
    return %c0_i32, %c0_i32_0 : i32, i32
  }
  func.func @transform_7(%arg0: i32) -> (i32, i32) {
    %c0_i32 = arith.constant 0 : i32
    %c0_i32_0 = arith.constant 0 : i32
    %c0_i32_1 = arith.constant 0 : i32
    return %c0_i32, %c0_i32_0 : i32, i32
  }
  func.func @transform_8(%arg0: i32) -> (i32, i32) {
    %c0_i32 = arith.constant 0 : i32
    %c0_i32_0 = arith.constant 0 : i32
    %c0_i32_1 = arith.constant 0 : i32
    return %c0_i32, %c0_i32_0 : i32, i32
  }
  func.func @transform_9(%arg0: i32) -> (i32, i32) {
    %c0_i32 = arith.constant 0 : i32
    %c0_i32_0 = arith.constant 0 : i32
    return %arg0, %c0_i32 : i32, i32
  }
}

module attributes {stable_mosaic.version = 11 : i64} {
  func.func @autoencoder_kernel(%arg0: i32, %arg1: memref<8x32xf32, #tpu.memory_space<vmem>>, %arg2: memref<32x128xf32, #tpu.memory_space<vmem>>, %arg3: memref<1x128xf32, #tpu.memory_space<vmem>>, %arg4: memref<128x128xf32, #tpu.memory_space<vmem>>, %arg5: memref<1x128xf32, #tpu.memory_space<vmem>>, %arg6: memref<128x128xf32, #tpu.memory_space<vmem>>, %arg7: memref<1x128xf32, #tpu.memory_space<vmem>>, %arg8: memref<128x32xf32, #tpu.memory_space<vmem>>, %arg9: memref<1x32xf32, #tpu.memory_space<vmem>>, %arg10: memref<8x32xf32, #tpu.memory_space<vmem>>) attributes {dimension_semantics = [#tpu.dimension_semantics<parallel>], iteration_bounds = array<i64: 1>, scalar_prefetch = 0 : i64, scratch_operands = 0 : i64, tpu.core_type = #tpu.core_type<tc>, window_params = [{transform_indices = @transform_0, window_bounds = array<i64: 8, 32>}, {pipeline_mode = #tpu.pipeline_mode<synchronous>, transform_indices = @transform_1, window_bounds = array<i64: 32, 128>}, {pipeline_mode = #tpu.pipeline_mode<synchronous>, transform_indices = @transform_2, window_bounds = array<i64: 1, 128>}, {pipeline_mode = #tpu.pipeline_mode<synchronous>, transform_indices = @transform_3, window_bounds = array<i64: 128, 128>}, {pipeline_mode = #tpu.pipeline_mode<synchronous>, transform_indices = @transform_4, window_bounds = array<i64: 1, 128>}, {pipeline_mode = #tpu.pipeline_mode<synchronous>, transform_indices = @transform_5, window_bounds = array<i64: 128, 128>}, {pipeline_mode = #tpu.pipeline_mode<synchronous>, transform_indices = @transform_6, window_bounds = array<i64: 1, 128>}, {pipeline_mode = #tpu.pipeline_mode<synchronous>, transform_indices = @transform_7, window_bounds = array<i64: 128, 32>}, {pipeline_mode = #tpu.pipeline_mode<synchronous>, transform_indices = @transform_8, window_bounds = array<i64: 1, 32>}, {transform_indices = @transform_9, window_bounds = array<i64: 8, 32>}]} {
    %c0 = arith.constant 0 : index
    %c0_0 = arith.constant 0 : index
    %0 = vector.load %arg1[%c0, %c0_0] : memref<8x32xf32, #tpu.memory_space<vmem>>, vector<8x32xf32>
    %c0_1 = arith.constant 0 : index
    %c0_2 = arith.constant 0 : index
    %1 = vector.load %arg2[%c0_1, %c0_2] : memref<32x128xf32, #tpu.memory_space<vmem>>, vector<32x128xf32>
    %cst = arith.constant dense<0.000000e+00> : vector<8x128xf32>
    %2 = tpu.matmul %0, %1, %cst {dimension_numbers = #tpu.dot_dimension_numbers<[1], [0], [0], [1], [0, 0, 1, 1], [], []>} : vector<8x32xf32>, vector<32x128xf32>, vector<8x128xf32> -> vector<8x128xf32>
    %c0_3 = arith.constant 0 : index
    %c0_4 = arith.constant 0 : index
    %3 = vector.load %arg3[%c0_3, %c0_4] : memref<1x128xf32, #tpu.memory_space<vmem>>, vector<1x128xf32>
    %4 = vector.broadcast %3 : vector<1x128xf32> to vector<8x128xf32>
    %5 = arith.addf %2, %4 : vector<8x128xf32>
    %cst_5 = arith.constant 5.000000e-01 : f32
    %6 = vector.broadcast %cst_5 : f32 to vector<8x128xf32>
    %7 = arith.mulf %6, %5 : vector<8x128xf32>
    %8 = math.tanh %7 : vector<8x128xf32>
    %cst_6 = arith.constant 5.000000e-01 : f32
    %9 = vector.broadcast %cst_6 : f32 to vector<8x128xf32>
    %10 = arith.mulf %9, %8 : vector<8x128xf32>
    %cst_7 = arith.constant 5.000000e-01 : f32
    %11 = vector.broadcast %cst_7 : f32 to vector<8x128xf32>
    %12 = arith.addf %10, %11 : vector<8x128xf32>
    %c0_8 = arith.constant 0 : index
    %c0_9 = arith.constant 0 : index
    %13 = vector.load %arg4[%c0_8, %c0_9] : memref<128x128xf32, #tpu.memory_space<vmem>>, vector<128x128xf32>
    %cst_10 = arith.constant dense<0.000000e+00> : vector<8x128xf32>
    %14 = tpu.matmul %12, %13, %cst_10 {dimension_numbers = #tpu.dot_dimension_numbers<[1], [0], [0], [1], [0, 0, 1, 1], [], []>} : vector<8x128xf32>, vector<128x128xf32>, vector<8x128xf32> -> vector<8x128xf32>
    %c0_11 = arith.constant 0 : index
    %c0_12 = arith.constant 0 : index
    %15 = vector.load %arg5[%c0_11, %c0_12] : memref<1x128xf32, #tpu.memory_space<vmem>>, vector<1x128xf32>
    %16 = vector.broadcast %15 : vector<1x128xf32> to vector<8x128xf32>
    %17 = arith.addf %14, %16 : vector<8x128xf32>
    %cst_13 = arith.constant 5.000000e-01 : f32
    %18 = vector.broadcast %cst_13 : f32 to vector<8x128xf32>
    %19 = arith.mulf %18, %17 : vector<8x128xf32>
    %20 = math.tanh %19 : vector<8x128xf32>
    %cst_14 = arith.constant 5.000000e-01 : f32
    %21 = vector.broadcast %cst_14 : f32 to vector<8x128xf32>
    %22 = arith.mulf %21, %20 : vector<8x128xf32>
    %cst_15 = arith.constant 5.000000e-01 : f32
    %23 = vector.broadcast %cst_15 : f32 to vector<8x128xf32>
    %24 = arith.addf %22, %23 : vector<8x128xf32>
    %c0_16 = arith.constant 0 : index
    %c0_17 = arith.constant 0 : index
    %25 = vector.load %arg6[%c0_16, %c0_17] : memref<128x128xf32, #tpu.memory_space<vmem>>, vector<128x128xf32>
    %cst_18 = arith.constant dense<0.000000e+00> : vector<8x128xf32>
    %26 = tpu.matmul %24, %25, %cst_18 {dimension_numbers = #tpu.dot_dimension_numbers<[1], [0], [0], [1], [0, 0, 1, 1], [], []>} : vector<8x128xf32>, vector<128x128xf32>, vector<8x128xf32> -> vector<8x128xf32>
    %c0_19 = arith.constant 0 : index
    %c0_20 = arith.constant 0 : index
    %27 = vector.load %arg7[%c0_19, %c0_20] : memref<1x128xf32, #tpu.memory_space<vmem>>, vector<1x128xf32>
    %28 = vector.broadcast %27 : vector<1x128xf32> to vector<8x128xf32>
    %29 = arith.addf %26, %28 : vector<8x128xf32>
    %cst_21 = arith.constant 5.000000e-01 : f32
    %30 = vector.broadcast %cst_21 : f32 to vector<8x128xf32>
    %31 = arith.mulf %30, %29 : vector<8x128xf32>
    %32 = math.tanh %31 : vector<8x128xf32>
    %cst_22 = arith.constant 5.000000e-01 : f32
    %33 = vector.broadcast %cst_22 : f32 to vector<8x128xf32>
    %34 = arith.mulf %33, %32 : vector<8x128xf32>
    %cst_23 = arith.constant 5.000000e-01 : f32
    %35 = vector.broadcast %cst_23 : f32 to vector<8x128xf32>
    %36 = arith.addf %34, %35 : vector<8x128xf32>
    %c0_24 = arith.constant 0 : index
    %c0_25 = arith.constant 0 : index
    %37 = vector.load %arg8[%c0_24, %c0_25] : memref<128x32xf32, #tpu.memory_space<vmem>>, vector<128x32xf32>
    %cst_26 = arith.constant dense<0.000000e+00> : vector<8x32xf32>
    %38 = tpu.matmul %36, %37, %cst_26 {dimension_numbers = #tpu.dot_dimension_numbers<[1], [0], [0], [1], [0, 0, 1, 1], [], []>} : vector<8x128xf32>, vector<128x32xf32>, vector<8x32xf32> -> vector<8x32xf32>
    %c0_27 = arith.constant 0 : index
    %c0_28 = arith.constant 0 : index
    %39 = vector.load %arg9[%c0_27, %c0_28] : memref<1x32xf32, #tpu.memory_space<vmem>>, vector<1x32xf32>
    %40 = vector.broadcast %39 : vector<1x32xf32> to vector<8x32xf32>
    %41 = arith.addf %38, %40 : vector<8x32xf32>
    %cst_29 = arith.constant 5.000000e-01 : f32
    %42 = vector.broadcast %cst_29 : f32 to vector<8x32xf32>
    %43 = arith.mulf %42, %41 : vector<8x32xf32>
    %44 = math.tanh %43 : vector<8x32xf32>
    %cst_30 = arith.constant 5.000000e-01 : f32
    %45 = vector.broadcast %cst_30 : f32 to vector<8x32xf32>
    %46 = arith.mulf %45, %44 : vector<8x32xf32>
    %cst_31 = arith.constant 5.000000e-01 : f32
    %47 = vector.broadcast %cst_31 : f32 to vector<8x32xf32>
    %48 = arith.addf %46, %47 : vector<8x32xf32>
    %c0_32 = arith.constant 0 : index
    %c0_33 = arith.constant 0 : index
    %49 = vector.load %arg10[%c0_32, %c0_33] : memref<8x32xf32, #tpu.memory_space<vmem>>, vector<8x32xf32>
    tpu.vector_store %arg10[%c0_32, %c0_33], %48 {strides = array<i32>} : memref<8x32xf32, #tpu.memory_space<vmem>>, vector<8x32xf32>,
    return
  }
  func.func @transform_0(%arg0: i32) -> (i32, i32) {
    %c0_i32 = arith.constant 0 : i32
    %c0_i32_0 = arith.constant 0 : i32
    return %arg0, %c0_i32 : i32, i32
  }
  func.func @transform_1(%arg0: i32) -> (i32, i32) {
    %c0_i32 = arith.constant 0 : i32
    %c0_i32_0 = arith.constant 0 : i32
    %c0_i32_1 = arith.constant 0 : i32
    return %c0_i32, %c0_i32_0 : i32, i32
  }
  func.func @transform_2(%arg0: i32) -> (i32, i32) {
    %c0_i32 = arith.constant 0 : i32
    %c0_i32_0 = arith.constant 0 : i32
    %c0_i32_1 = arith.constant 0 : i32
    return %c0_i32, %c0_i32_0 : i32, i32
  }
  func.func @transform_3(%arg0: i32) -> (i32, i32) {
    %c0_i32 = arith.constant 0 : i32
    %c0_i32_0 = arith.constant 0 : i32
    %c0_i32_1 = arith.constant 0 : i32
    return %c0_i32, %c0_i32_0 : i32, i32
  }
  func.func @transform_4(%arg0: i32) -> (i32, i32) {
    %c0_i32 = arith.constant 0 : i32
    %c0_i32_0 = arith.constant 0 : i32
    %c0_i32_1 = arith.constant 0 : i32
    return %c0_i32, %c0_i32_0 : i32, i32
  }
  func.func @transform_5(%arg0: i32) -> (i32, i32) {
    %c0_i32 = arith.constant 0 : i32
    %c0_i32_0 = arith.constant 0 : i32
    %c0_i32_1 = arith.constant 0 : i32
    return %c0_i32, %c0_i32_0 : i32, i32
  }
  func.func @transform_6(%arg0: i32) -> (i32, i32) {
    %c0_i32 = arith.constant 0 : i32
    %c0_i32_0 = arith.constant 0 : i32
    %c0_i32_1 = arith.constant 0 : i32
    return %c0_i32, %c0_i32_0 : i32, i32
  }
  func.func @transform_7(%arg0: i32) -> (i32, i32) {
    %c0_i32 = arith.constant 0 : i32
    %c0_i32_0 = arith.constant 0 : i32
    %c0_i32_1 = arith.constant 0 : i32
    return %c0_i32, %c0_i32_0 : i32, i32
  }
  func.func @transform_8(%arg0: i32) -> (i32, i32) {
    %c0_i32 = arith.constant 0 : i32
    %c0_i32_0 = arith.constant 0 : i32
    %c0_i32_1 = arith.constant 0 : i32
    return %c0_i32, %c0_i32_0 : i32, i32
  }
  func.func @transform_9(%arg0: i32) -> (i32, i32) {
    %c0_i32 = arith.constant 0 : i32
    %c0_i32_0 = arith.constant 0 : i32
    return %arg0, %c0_i32 : i32, i32
  }
}

</mosaic_0001>

<llo_original>
// kernel: tpu_custom_call.1
$region0: #{tpu_custom_call.1}
  #allocation0 [shape = 'u32[]', space=smem, size = 0x4, offset = 0x4, fixed_abs, tag = 'smem constant byte address 0x4 - core index']
  #allocation1 [shape = 'u32[144,128]{1,0:T(1,128)}', space=vmem, size = 0x12000, scoped, tag = 'internal scratch']
  %s0 = inlined_call_operand.hbm [shape: f32[8,32], index: 0, kind: input, shape index: {}]
  %s1 = inlined_call_operand.vmem [shape: f32[32,128], index: 1, kind: input, shape index: {}]
  %s2 = inlined_call_operand.vmem [shape: f32[1,128], index: 2, kind: input, shape index: {}]
  %s3 = inlined_call_operand.vmem [shape: f32[128,128], index: 3, kind: input, shape index: {}]
  %s4 = inlined_call_operand.vmem [shape: f32[1,128], index: 4, kind: input, shape index: {}]
  %s5 = inlined_call_operand.hbm [shape: f32[128,128], index: 5, kind: input, shape index: {}]
  %s6 = inlined_call_operand.vmem [shape: f32[1,128], index: 6, kind: input, shape index: {}]
  %s7 = inlined_call_operand.vmem [shape: f32[128,32], index: 7, kind: input, shape index: {}]
  %s8 = inlined_call_operand.vmem [shape: f32[1,32], index: 8, kind: input, shape index: {}]
  %s9 = inlined_call_operand.hbm [shape: f32[8,32], index: 9, kind: output, shape index: {}]
  %s10 = sld [smem:[#allocation0]]
  $region54: #{tpu_custom_call.1} parent=0
    _
  %s12 = ssub.s32 1, %s10
  %s13 = scalar_select 0, %s12, %s10
  $region1: #{tpu_custom_call.1} parent=0
    #allocation2 [shape = 'u8[4096]{0}', space=vmem, size = 0x1000, scoped, tag = 'input window, operand 0, single buffered']
    #allocation3 [shape = 's32[1]{0}', space=sflag, size = 0x4, scoped, tag = 'scoped memory for tpu_custom_call.1']
    #allocation4 [shape = 's32[1]{0}', space=sflag, size = 0x4, scoped, tag = 'scoped memory for tpu_custom_call.1']
    #allocation5 [shape = 'u8[65536]{0}', space=vmem, size = 0x10000, scoped, tag = 'input window, operand 5, single buffered']
    #allocation6 [shape = 's32[1]{0}', space=sflag, size = 0x4, scoped, tag = 'scoped memory for tpu_custom_call.1']
    #allocation7 [shape = 'u8[4096]{0}', space=vmem, size = 0x1000, scoped, tag = 'output window, operand 0, single buffered']
    %14 = vsyncpa [#allocation3], 0
    %15 = vsyncpa [#allocation6], 0
    %16 = vsyncpa [#allocation4], 0
    // Predicated region
    $region2: #{tpu_custom_call.1} parent=1 // pred_check
      _
    $region3: #{tpu_custom_call.1} parent=1 // pred_check_branch
      %18 = sbr.rel (0) target = $region5
    $region4: #{tpu_custom_call.1} parent=1 // pred_region
      %s20 = ssub.s32 128, 128
      %21 = vsyncadd [#allocation3], %s20
      %s23 = sshll.u32 [#allocation2], 4
      %s24 = int_to_ptr.vmem [resolvable:$true] %s23
      %26 = dma.hbm_to_vmem [thread:$0]  %s0, 128, %s24, [#allocation3]
    $region5: #{tpu_custom_call.1} parent=1 // pred_fallthru
      _
    // Predicated region
    $region6: #{tpu_custom_call.1} parent=1 // pred_check
      _
    $region7: #{tpu_custom_call.1} parent=1 // pred_check_branch
      %28 = sbr.rel (0) target = $region9
    $region8: #{tpu_custom_call.1} parent=1 // pred_region
      _
    $region9: #{tpu_custom_call.1} parent=1 // pred_fallthru
      _
    // Predicated region
    $region10: #{tpu_custom_call.1} parent=1 // pred_check
      _
    $region11: #{tpu_custom_call.1} parent=1 // pred_check_branch
      %30 = sbr.rel (0) target = $region13
    $region12: #{tpu_custom_call.1} parent=1 // pred_region
      _
    $region13: #{tpu_custom_call.1} parent=1 // pred_fallthru
      _
    // Predicated region
    $region14: #{tpu_custom_call.1} parent=1 // pred_check
      _
    $region15: #{tpu_custom_call.1} parent=1 // pred_check_branch
      %32 = sbr.rel (0) target = $region17
    $region16: #{tpu_custom_call.1} parent=1 // pred_region
      _
    $region17: #{tpu_custom_call.1} parent=1 // pred_fallthru
      _
    // Predicated region
    $region18: #{tpu_custom_call.1} parent=1 // pred_check
      _
    $region19: #{tpu_custom_call.1} parent=1 // pred_check_branch
      %34 = sbr.rel (0) target = $region21
    $region20: #{tpu_custom_call.1} parent=1 // pred_region
      _
    $region21: #{tpu_custom_call.1} parent=1 // pred_fallthru
      _
    // Predicated region
    $region22: #{tpu_custom_call.1} parent=1 // pred_check
      _
    $region23: #{tpu_custom_call.1} parent=1 // pred_check_branch
      %36 = sbr.rel (0) target = $region25
    $region24: #{tpu_custom_call.1} parent=1 // pred_region
      %s38 = ssub.s32 2048, 2048
      %39 = vsyncadd [#allocation6], %s38
      %s40 = sshll.u32 [#allocation5], 4
      %s41 = int_to_ptr.vmem [resolvable:$true] %s40
      %46 = dma.hbm_to_vmem [thread:$0]  %s5, 2048, %s41, [#allocation6], 128, 128, 8
    $region25: #{tpu_custom_call.1} parent=1 // pred_fallthru
      _
    // Predicated region
    $region26: #{tpu_custom_call.1} parent=1 // pred_check
      _
    $region27: #{tpu_custom_call.1} parent=1 // pred_check_branch
      %48 = sbr.rel (0) target = $region29
    $region28: #{tpu_custom_call.1} parent=1 // pred_region
      _
    $region29: #{tpu_custom_call.1} parent=1 // pred_fallthru
      _
    // Predicated region
    $region30: #{tpu_custom_call.1} parent=1 // pred_check
      _
    $region31: #{tpu_custom_call.1} parent=1 // pred_check_branch
      %50 = sbr.rel (0) target = $region33
    $region32: #{tpu_custom_call.1} parent=1 // pred_region
      _
    $region33: #{tpu_custom_call.1} parent=1 // pred_fallthru
      _
    // Predicated region
    $region34: #{tpu_custom_call.1} parent=1 // pred_check
      _
    $region35: #{tpu_custom_call.1} parent=1 // pred_check_branch
      %52 = sbr.rel (0) target = $region37
    $region36: #{tpu_custom_call.1} parent=1 // pred_region
      _
    $region37: #{tpu_custom_call.1} parent=1 // pred_fallthru
      _
    // Predicated region
    $region38: #{tpu_custom_call.1} parent=1 // pred_check
      _
    $region39: #{tpu_custom_call.1} parent=1 // pred_check_branch
      %54 = sbr.rel (0) target = $region41
    $region40: #{tpu_custom_call.1} parent=1 // pred_region
      %55 = dma.done [#allocation3], 128
    $region41: #{tpu_custom_call.1} parent=1 // pred_fallthru
      _
    // Predicated region
    $region42: #{tpu_custom_call.1} parent=1 // pred_check
      _
    $region43: #{tpu_custom_call.1} parent=1 // pred_check_branch
      %57 = sbr.rel (0) target = $region45
    $region44: #{tpu_custom_call.1} parent=1 // pred_region
      %58 = dma.done [#allocation6], 2048
    $region45: #{tpu_custom_call.1} parent=1 // pred_fallthru
      _
    %v59 = vld [vmem:[#allocation2] sm:$0xff]
    %v60 = vld [vmem:[%s1] sm:$0xff]
    %v61 = vld [vmem:[%s1 + $0x8] sm:$0xff]
    %v62 = vld [vmem:[%s1 + $0x10] sm:$0xff]
    %v63 = vld [vmem:[%s1 + $0x18] sm:$0xff]
    %v64 = vld [vmem:[%s2] sm:$0x1]
    %v66 = vlaneseq
    %v67 = vshrl.u32 %v66, 7
    %v68 = vsub.s32 0, %v67
    %v69 = vrot.slane %v64, %v68
    %vm71 = vcmask 261120
    %v73 = vsel %vm71, %v59, 0
    %75 = vmatprep.subr.mxu0 0.0
    %76 = vmatpush1.msra.mxu0 0.0
    %77 = vmatprep.subr.mxu0 0.0
    %78 = vmatpush1.msra.mxu0 0.0
    %79 = vmatprep.subr.mxu0 0.0
    %80 = vmatpush1.msra.mxu0 0.0
    %81 = vmatprep.subr.mxu0 0.0
    %82 = vmatpush1.msra.mxu0 0.0
    %83 = vmatprep.subr.mxu0 0.0
    %84 = vmatpush1.msra.mxu0 0.0
    %85 = vmatprep.subr.mxu0 0.0
    %86 = vmatpush1.msra.mxu0 0.0
    %87 = vmatprep.subr.mxu0 0.0
    %88 = vmatpush1.msra.mxu0 0.0
    %89 = vmatprep.subr.mxu0 0.0
    %90 = vmatpush1.msra.mxu0 0.0
    %91 = vmatprep.subr.mxu0 0.0
    %92 = vmatpush1.msra.mxu0 0.0
    %93 = vmatprep.subr.mxu0 0.0
    %94 = vmatpush1.msra.mxu0 0.0
    %95 = vmatprep.subr.mxu0 0.0
    %96 = vmatpush1.msra.mxu0 0.0
    %97 = vmatprep.subr.mxu0 0.0
    %98 = vmatpush1.msra.mxu0 0.0
    %99 = vmatprep.subr.mxu0 0.0
    %100 = vmatpush1.msra.mxu0 %v63
    %101 = vmatprep.subr.mxu0 0.0
    %102 = vmatpush1.msra.mxu0 %v62
    %103 = vmatprep.subr.mxu0 0.0
    %104 = vmatpush1.msra.mxu0 %v61
    %105 = vmatprep.subr.mxu0 0.0
    %106 = vmatpush1.msra.mxu0 %v60
    %107 = vmatprep.subr.mxu0 0.0
    %108 = vmatpush2.msra.mxu0 0.0
    %109 = vmatprep.subr.mxu0 0.0
    %110 = vmatpush2.msra.mxu0 0.0
    %111 = vmatprep.subr.mxu0 0.0
    %112 = vmatpush2.msra.mxu0 0.0
    %113 = vmatprep.subr.mxu0 0.0
    %114 = vmatpush2.msra.mxu0 0.0
    %115 = vmatprep.subr.mxu0 0.0
    %116 = vmatpush2.msra.mxu0 0.0
    %117 = vmatprep.subr.mxu0 0.0
    %118 = vmatpush2.msra.mxu0 0.0
    %119 = vmatprep.subr.mxu0 0.0
    %120 = vmatpush2.msra.mxu0 0.0
    %121 = vmatprep.subr.mxu0 0.0
    %122 = vmatpush2.msra.mxu0 0.0
    %123 = vmatprep.subr.mxu0 0.0
    %124 = vmatpush2.msra.mxu0 0.0
    %125 = vmatprep.subr.mxu0 0.0
    %126 = vmatpush2.msra.mxu0 0.0
    %127 = vmatprep.subr.mxu0 0.0
    %128 = vmatpush2.msra.mxu0 0.0
    %129 = vmatprep.subr.mxu0 0.0
    %130 = vmatpush2.msra.mxu0 0.0
    %131 = vmatprep.subr.mxu0 0.0
    %132 = vmatpush2.msra.mxu0 0.0
    %133 = vmatprep.subr.mxu0 0.0
    %134 = vmatpush2.msra.mxu0 0.0
    %135 = vmatprep.subr.mxu0 0.0
    %136 = vmatpush2.msra.mxu0 0.0
    %137 = vmatprep.subr.mxu0 0.0
    %138 = vmatpush2.msra.mxu0 0.0
    %139 = vmatprep.mubr.f32.mxu0 0.0
    %140 = vmatmul.mubr.f32.gmra.mxu0 %v73
    %v141 = vpop.f32.mrf.mxu0
    %v142 = vadd.f32 %v69, %v141
    %v143 = vpop.f32.mrf.mxu0
    %144 = vdwg.mxu0
    %v145 = vmul.f32 %v142, 0.5
    %v146 = vtanh.pop %v145
    %v147 = vmul.f32 %v146, 0.5
    %v148 = vadd.f32 %v147, 0.5
    %v149 = vld [vmem:[%s3] sm:$0xff]
    %v150 = vld [vmem:[%s3 + $0x8] sm:$0xff]
    %v151 = vld [vmem:[%s3 + $0x10] sm:$0xff]
    %v152 = vld [vmem:[%s3 + $0x18] sm:$0xff]
    %v153 = vld [vmem:[%s3 + $0x20] sm:$0xff]
    %v154 = vld [vmem:[%s3 + $0x28] sm:$0xff]
    %v155 = vld [vmem:[%s3 + $0x30] sm:$0xff]
    %v156 = vld [vmem:[%s3 + $0x38] sm:$0xff]
    %v157 = vld [vmem:[%s3 + $0x40] sm:$0xff]
    %v158 = vld [vmem:[%s3 + $0x48] sm:$0xff]
    %v159 = vld [vmem:[%s3 + $0x50] sm:$0xff]
    %v160 = vld [vmem:[%s3 + $0x58] sm:$0xff]
    %v161 = vld [vmem:[%s3 + $0x60] sm:$0xff]
    %v162 = vld [vmem:[%s3 + $0x68] sm:$0xff]
    %v163 = vld [vmem:[%s3 + $0x70] sm:$0xff]
    %v164 = vld [vmem:[%s3 + $0x78] sm:$0xff]
    %v165 = vld [vmem:[%s4] sm:$0x1]
    %v167 = vlaneseq
    %v168 = vshrl.u32 %v167, 7
    %v169 = vsub.s32 0, %v168
    %v170 = vrot.slane %v165, %v169
    %172 = vmatprep.subr.mxu0 0.0
    %173 = vmatpush1.msra.mxu0 %v164
    %174 = vmatprep.subr.mxu0 0.0
    %175 = vmatpush1.msra.mxu0 %v163
    %176 = vmatprep.subr.mxu0 0.0
    %177 = vmatpush1.msra.mxu0 %v162
    %178 = vmatprep.subr.mxu0 0.0
    %179 = vmatpush1.msra.mxu0 %v161
    %180 = vmatprep.subr.mxu0 0.0
    %181 = vmatpush1.msra.mxu0 %v160
    %182 = vmatprep.subr.mxu0 0.0
    %183 = vmatpush1.msra.mxu0 %v159
    %184 = vmatprep.subr.mxu0 0.0
    %185 = vmatpush1.msra.mxu0 %v158
    %186 = vmatprep.subr.mxu0 0.0
    %187 = vmatpush1.msra.mxu0 %v157
    %188 = vmatprep.subr.mxu0 0.0
    %189 = vmatpush1.msra.mxu0 %v156
    %190 = vmatprep.subr.mxu0 0.0
    %191 = vmatpush1.msra.mxu0 %v155
    %192 = vmatprep.subr.mxu0 0.0
    %193 = vmatpush1.msra.mxu0 %v154
    %194 = vmatprep.subr.mxu0 0.0
    %195 = vmatpush1.msra.mxu0 %v153
    %196 = vmatprep.subr.mxu0 0.0
    %197 = vmatpush1.msra.mxu0 %v152
    %198 = vmatprep.subr.mxu0 0.0
    %199 = vmatpush1.msra.mxu0 %v151
    %200 = vmatprep.subr.mxu0 0.0
    %201 = vmatpush1.msra.mxu0 %v150
    %202 = vmatprep.subr.mxu0 0.0
    %203 = vmatpush1.msra.mxu0 %v149
    %204 = vmatprep.subr.mxu0 0.0
    %205 = vmatpush2.msra.mxu0 0.0
    %206 = vmatprep.subr.mxu0 0.0
    %207 = vmatpush2.msra.mxu0 0.0
    %208 = vmatprep.subr.mxu0 0.0
    %209 = vmatpush2.msra.mxu0 0.0
    %210 = vmatprep.subr.mxu0 0.0
    %211 = vmatpush2.msra.mxu0 0.0
    %212 = vmatprep.subr.mxu0 0.0
    %213 = vmatpush2.msra.mxu0 0.0
    %214 = vmatprep.subr.mxu0 0.0
    %215 = vmatpush2.msra.mxu0 0.0
    %216 = vmatprep.subr.mxu0 0.0
    %217 = vmatpush2.msra.mxu0 0.0
    %218 = vmatprep.subr.mxu0 0.0
    %219 = vmatpush2.msra.mxu0 0.0
    %220 = vmatprep.subr.mxu0 0.0
    %221 = vmatpush2.msra.mxu0 0.0
    %222 = vmatprep.subr.mxu0 0.0
    %223 = vmatpush2.msra.mxu0 0.0
    %224 = vmatprep.subr.mxu0 0.0
    %225 = vmatpush2.msra.mxu0 0.0
    %226 = vmatprep.subr.mxu0 0.0
    %227 = vmatpush2.msra.mxu0 0.0
    %228 = vmatprep.subr.mxu0 0.0
    %229 = vmatpush2.msra.mxu0 0.0
    %230 = vmatprep.subr.mxu0 0.0
    %231 = vmatpush2.msra.mxu0 0.0
    %232 = vmatprep.subr.mxu0 0.0
    %233 = vmatpush2.msra.mxu0 0.0
    %234 = vmatprep.subr.mxu0 0.0
    %235 = vmatpush2.msra.mxu0 0.0
    %236 = vmatprep.mubr.f32.mxu0 0.0
    %237 = vmatmul.mubr.f32.gmra.mxu0 %v148
    %v238 = vpop.f32.mrf.mxu0
    %v239 = vadd.f32 %v170, %v238
    %v240 = vpop.f32.mrf.mxu0
    %241 = vdwg.mxu0
    %v242 = vmul.f32 %v239, 0.5
    %v243 = vtanh.pop %v242
    %v244 = vmul.f32 %v243, 0.5
    %v245 = vadd.f32 %v244, 0.5
    %v246 = vld [vmem:[#allocation5] sm:$0xff]
    %v247 = vld [vmem:[#allocation5 + $0x8] sm:$0xff]
    %v248 = vld [vmem:[#allocation5 + $0x10] sm:$0xff]
    %v249 = vld [vmem:[#allocation5 + $0x18] sm:$0xff]
    %v250 = vld [vmem:[#allocation5 + $0x20] sm:$0xff]
    %v251 = vld [vmem:[#allocation5 + $0x28] sm:$0xff]
    %v252 = vld [vmem:[#allocation5 + $0x30] sm:$0xff]
    %v253 = vld [vmem:[#allocation5 + $0x38] sm:$0xff]
    %v254 = vld [vmem:[#allocation5 + $0x40] sm:$0xff]
    %v255 = vld [vmem:[#allocation5 + $0x48] sm:$0xff]
    %v256 = vld [vmem:[#allocation5 + $0x50] sm:$0xff]
    %v257 = vld [vmem:[#allocation5 + $0x58] sm:$0xff]
    %v258 = vld [vmem:[#allocation5 + $0x60] sm:$0xff]
    %v259 = vld [vmem:[#allocation5 + $0x68] sm:$0xff]
    %v260 = vld [vmem:[#allocation5 + $0x70] sm:$0xff]
    %v261 = vld [vmem:[#allocation5 + $0x78] sm:$0xff]
    %v262 = vld [vmem:[%s6] sm:$0x1]
    %v264 = vlaneseq
    %v265 = vshrl.u32 %v264, 7
    %v266 = vsub.s32 0, %v265
    %v267 = vrot.slane %v262, %v266
    %269 = vmatprep.subr.mxu0 0.0
    %270 = vmatpush1.msra.mxu0 %v261
    %271 = vmatprep.subr.mxu0 0.0
    %272 = vmatpush1.msra.mxu0 %v260
    %273 = vmatprep.subr.mxu0 0.0
    %274 = vmatpush1.msra.mxu0 %v259
    %275 = vmatprep.subr.mxu0 0.0
    %276 = vmatpush1.msra.mxu0 %v258
    %277 = vmatprep.subr.mxu0 0.0
    %278 = vmatpush1.msra.mxu0 %v257
    %279 = vmatprep.subr.mxu0 0.0
    %280 = vmatpush1.msra.mxu0 %v256
    %281 = vmatprep.subr.mxu0 0.0
    %282 = vmatpush1.msra.mxu0 %v255
    %283 = vmatprep.subr.mxu0 0.0
    %284 = vmatpush1.msra.mxu0 %v254
    %285 = vmatprep.subr.mxu0 0.0
    %286 = vmatpush1.msra.mxu0 %v253
    %287 = vmatprep.subr.mxu0 0.0
    %288 = vmatpush1.msra.mxu0 %v252
    %289 = vmatprep.subr.mxu0 0.0
    %290 = vmatpush1.msra.mxu0 %v251
    %291 = vmatprep.subr.mxu0 0.0
    %292 = vmatpush1.msra.mxu0 %v250
    %293 = vmatprep.subr.mxu0 0.0
    %294 = vmatpush1.msra.mxu0 %v249
    %295 = vmatprep.subr.mxu0 0.0
    %296 = vmatpush1.msra.mxu0 %v248
    %297 = vmatprep.subr.mxu0 0.0
    %298 = vmatpush1.msra.mxu0 %v247
    %299 = vmatprep.subr.mxu0 0.0
    %300 = vmatpush1.msra.mxu0 %v246
    %301 = vmatprep.subr.mxu0 0.0
    %302 = vmatpush2.msra.mxu0 0.0
    %303 = vmatprep.subr.mxu0 0.0
    %304 = vmatpush2.msra.mxu0 0.0
    %305 = vmatprep.subr.mxu0 0.0
    %306 = vmatpush2.msra.mxu0 0.0
    %307 = vmatprep.subr.mxu0 0.0
    %308 = vmatpush2.msra.mxu0 0.0
    %309 = vmatprep.subr.mxu0 0.0
    %310 = vmatpush2.msra.mxu0 0.0
    %311 = vmatprep.subr.mxu0 0.0
    %312 = vmatpush2.msra.mxu0 0.0
    %313 = vmatprep.subr.mxu0 0.0
    %314 = vmatpush2.msra.mxu0 0.0
    %315 = vmatprep.subr.mxu0 0.0
    %316 = vmatpush2.msra.mxu0 0.0
    %317 = vmatprep.subr.mxu0 0.0
    %318 = vmatpush2.msra.mxu0 0.0
    %319 = vmatprep.subr.mxu0 0.0
    %320 = vmatpush2.msra.mxu0 0.0
    %321 = vmatprep.subr.mxu0 0.0
    %322 = vmatpush2.msra.mxu0 0.0
    %323 = vmatprep.subr.mxu0 0.0
    %324 = vmatpush2.msra.mxu0 0.0
    %325 = vmatprep.subr.mxu0 0.0
    %326 = vmatpush2.msra.mxu0 0.0
    %327 = vmatprep.subr.mxu0 0.0
    %328 = vmatpush2.msra.mxu0 0.0
    %329 = vmatprep.subr.mxu0 0.0
    %330 = vmatpush2.msra.mxu0 0.0
    %331 = vmatprep.subr.mxu0 0.0
    %332 = vmatpush2.msra.mxu0 0.0
    %333 = vmatprep.mubr.f32.mxu0 0.0
    %334 = vmatmul.mubr.f32.gmra.mxu0 %v245
    %v335 = vpop.f32.mrf.mxu0
    %v336 = vadd.f32 %v267, %v335
    %v337 = vpop.f32.mrf.mxu0
    %338 = vdwg.mxu0
    %v339 = vmul.f32 %v336, 0.5
    %v340 = vtanh.pop %v339
    %v341 = vmul.f32 %v340, 0.5
    %v342 = vadd.f32 %v341, 0.5
    %v343 = vld [vmem:[%s7] sm:$0xff]
    %v344 = vld [vmem:[%s7 + $0x8] sm:$0xff]
    %v345 = vld [vmem:[%s7 + $0x10] sm:$0xff]
    %v346 = vld [vmem:[%s7 + $0x18] sm:$0xff]
    %v347 = vld [vmem:[%s7 + $0x20] sm:$0xff]
    %v348 = vld [vmem:[%s7 + $0x28] sm:$0xff]
    %v349 = vld [vmem:[%s7 + $0x30] sm:$0xff]
    %v350 = vld [vmem:[%s7 + $0x38] sm:$0xff]
    %v351 = vld [vmem:[%s7 + $0x40] sm:$0xff]
    %v352 = vld [vmem:[%s7 + $0x48] sm:$0xff]
    %v353 = vld [vmem:[%s7 + $0x50] sm:$0xff]
    %v354 = vld [vmem:[%s7 + $0x58] sm:$0xff]
    %v355 = vld [vmem:[%s7 + $0x60] sm:$0xff]
    %v356 = vld [vmem:[%s7 + $0x68] sm:$0xff]
    %v357 = vld [vmem:[%s7 + $0x70] sm:$0xff]
    %v358 = vld [vmem:[%s7 + $0x78] sm:$0xff]
    %v359 = vld [vmem:[%s8] sm:$0x1]
    %v361 = vlaneseq
    %v362 = vshrl.u32 %v361, 7
    %v363 = vsub.s32 0, %v362
    %v364 = vrot.slane %v359, %v363
    %366 = vmatprep.subr.mxu0 0.0
    %367 = vmatpush1.msra.mxu0 %v358
    %368 = vmatprep.subr.mxu0 0.0
    %369 = vmatpush1.msra.mxu0 %v357
    %370 = vmatprep.subr.mxu0 0.0
    %371 = vmatpush1.msra.mxu0 %v356
    %372 = vmatprep.subr.mxu0 0.0
    %373 = vmatpush1.msra.mxu0 %v355
    %374 = vmatprep.subr.mxu0 0.0
    %375 = vmatpush1.msra.mxu0 %v354
    %376 = vmatprep.subr.mxu0 0.0
    %377 = vmatpush1.msra.mxu0 %v353
    %378 = vmatprep.subr.mxu0 0.0
    %379 = vmatpush1.msra.mxu0 %v352
    %380 = vmatprep.subr.mxu0 0.0
    %381 = vmatpush1.msra.mxu0 %v351
    %382 = vmatprep.subr.mxu0 0.0
    %383 = vmatpush1.msra.mxu0 %v350
    %384 = vmatprep.subr.mxu0 0.0
    %385 = vmatpush1.msra.mxu0 %v349
    %386 = vmatprep.subr.mxu0 0.0
    %387 = vmatpush1.msra.mxu0 %v348
    %388 = vmatprep.subr.mxu0 0.0
    %389 = vmatpush1.msra.mxu0 %v347
    %390 = vmatprep.subr.mxu0 0.0
    %391 = vmatpush1.msra.mxu0 %v346
    %392 = vmatprep.subr.mxu0 0.0
    %393 = vmatpush1.msra.mxu0 %v345
    %394 = vmatprep.subr.mxu0 0.0
    %395 = vmatpush1.msra.mxu0 %v344
    %396 = vmatprep.subr.mxu0 0.0
    %397 = vmatpush1.msra.mxu0 %v343
    %398 = vmatprep.subr.mxu0 0.0
    %399 = vmatpush2.msra.mxu0 0.0
    %400 = vmatprep.subr.mxu0 0.0
    %401 = vmatpush2.msra.mxu0 0.0
    %402 = vmatprep.subr.mxu0 0.0
    %403 = vmatpush2.msra.mxu0 0.0
    %404 = vmatprep.subr.mxu0 0.0
    %405 = vmatpush2.msra.mxu0 0.0
    %406 = vmatprep.subr.mxu0 0.0
    %407 = vmatpush2.msra.mxu0 0.0
    %408 = vmatprep.subr.mxu0 0.0
    %409 = vmatpush2.msra.mxu0 0.0
    %410 = vmatprep.subr.mxu0 0.0
    %411 = vmatpush2.msra.mxu0 0.0
    %412 = vmatprep.subr.mxu0 0.0
    %413 = vmatpush2.msra.mxu0 0.0
    %414 = vmatprep.subr.mxu0 0.0
    %415 = vmatpush2.msra.mxu0 0.0
    %416 = vmatprep.subr.mxu0 0.0
    %417 = vmatpush2.msra.mxu0 0.0
    %418 = vmatprep.subr.mxu0 0.0
    %419 = vmatpush2.msra.mxu0 0.0
    %420 = vmatprep.subr.mxu0 0.0
    %421 = vmatpush2.msra.mxu0 0.0
    %422 = vmatprep.subr.mxu0 0.0
    %423 = vmatpush2.msra.mxu0 0.0
    %424 = vmatprep.subr.mxu0 0.0
    %425 = vmatpush2.msra.mxu0 0.0
    %426 = vmatprep.subr.mxu0 0.0
    %427 = vmatpush2.msra.mxu0 0.0
    %428 = vmatprep.subr.mxu0 0.0
    %429 = vmatpush2.msra.mxu0 0.0
    %430 = vmatprep.mubr.f32.mxu0 0.0
    %431 = vmatmul.mubr.f32.gmra.mxu0 %v342
    %v432 = vpop.f32.mrf.mxu0
    %v433 = vadd.f32 %v364, %v432
    %v434 = vpop.f32.mrf.mxu0
    %435 = vdwg.mxu0
    %v436 = vmul.f32 %v433, 0.5
    %v437 = vtanh.pop %v436
    %v438 = vmul.f32 %v437, 0.5
    %v439 = vadd.f32 %v438, 0.5
    %440 = vst.msk [vmem:[#allocation7] sm:$0xff] %vm71, %v439
    // Predicated region
    $region46: #{tpu_custom_call.1} parent=1 // pred_check
      _
    $region47: #{tpu_custom_call.1} parent=1 // pred_check_branch
      %442 = sbr.rel (0) target = $region49
    $region48: #{tpu_custom_call.1} parent=1 // pred_region
      %s444 = ssub.s32 128, 128
      %445 = vsyncadd [#allocation4], %s444
      %s447 = sshll.u32 [#allocation7], 4
      %s448 = int_to_ptr.vmem [resolvable:$true] %s447
      %450 = dma.vmem_to_hbm [thread:$0]  %s448, 128, %s9, [#allocation4]
    $region49: #{tpu_custom_call.1} parent=1 // pred_fallthru
      _
    // Predicated region
    $region50: #{tpu_custom_call.1} parent=1 // pred_check
      _
    $region51: #{tpu_custom_call.1} parent=1 // pred_check_branch
      %452 = sbr.rel (0) target = $region53
    $region52: #{tpu_custom_call.1} parent=1 // pred_region
      %453 = dma.done [#allocation4], 128
    $region53: #{tpu_custom_call.1} parent=1 // pred_fallthru
      _
    %454 = vsyncpa [#allocation3], 1
    %455 = vsyncpa [#allocation6], 1
    %456 = vsyncpa [#allocation4], 1

// kernel: tpu_custom_call.1
$region0: #{tpu_custom_call.1}
  #allocation0 [shape = 'u32[]', space=smem, size = 0x4, offset = 0x4, fixed_abs, tag = 'smem constant byte address 0x4 - core index']
  #allocation1 [shape = 'u32[144,128]{1,0:T(1,128)}', space=vmem, size = 0x12000, scoped, tag = 'internal scratch']
  %s0 = inlined_call_operand.hbm [shape: f32[8,32], index: 0, kind: input, shape index: {}]
  %s1 = inlined_call_operand.vmem [shape: f32[32,128], index: 1, kind: input, shape index: {}]
  %s2 = inlined_call_operand.vmem [shape: f32[1,128], index: 2, kind: input, shape index: {}]
  %s3 = inlined_call_operand.vmem [shape: f32[128,128], index: 3, kind: input, shape index: {}]
  %s4 = inlined_call_operand.vmem [shape: f32[1,128], index: 4, kind: input, shape index: {}]
  %s5 = inlined_call_operand.hbm [shape: f32[128,128], index: 5, kind: input, shape index: {}]
  %s6 = inlined_call_operand.vmem [shape: f32[1,128], index: 6, kind: input, shape index: {}]
  %s7 = inlined_call_operand.vmem [shape: f32[128,32], index: 7, kind: input, shape index: {}]
  %s8 = inlined_call_operand.vmem [shape: f32[1,32], index: 8, kind: input, shape index: {}]
  %s9 = inlined_call_operand.hbm [shape: f32[8,32], index: 9, kind: output, shape index: {}]
  %s10 = sld [smem:[#allocation0]]
  $region54: #{tpu_custom_call.1} parent=0
    _
  %s12 = ssub.s32 1, %s10
  %s13 = scalar_select 0, %s12, %s10
  $region1: #{tpu_custom_call.1} parent=0
    #allocation2 [shape = 'u8[4096]{0}', space=vmem, size = 0x1000, scoped, tag = 'input window, operand 0, single buffered']
    #allocation3 [shape = 's32[1]{0}', space=sflag, size = 0x4, scoped, tag = 'scoped memory for tpu_custom_call.1']
    #allocation4 [shape = 's32[1]{0}', space=sflag, size = 0x4, scoped, tag = 'scoped memory for tpu_custom_call.1']
    #allocation5 [shape = 'u8[65536]{0}', space=vmem, size = 0x10000, scoped, tag = 'input window, operand 5, single buffered']
    #allocation6 [shape = 's32[1]{0}', space=sflag, size = 0x4, scoped, tag = 'scoped memory for tpu_custom_call.1']
    #allocation7 [shape = 'u8[4096]{0}', space=vmem, size = 0x1000, scoped, tag = 'output window, operand 0, single buffered']
    %14 = vsyncpa [#allocation3], 0
    %15 = vsyncpa [#allocation6], 0
    %16 = vsyncpa [#allocation4], 0
    // Predicated region
    $region2: #{tpu_custom_call.1} parent=1 // pred_check
      _
    $region3: #{tpu_custom_call.1} parent=1 // pred_check_branch
      %18 = sbr.rel (0) target = $region5
    $region4: #{tpu_custom_call.1} parent=1 // pred_region
      %s20 = ssub.s32 128, 128
      %21 = vsyncadd [#allocation3], %s20
      %s23 = sshll.u32 [#allocation2], 4
      %s24 = int_to_ptr.vmem [resolvable:$true] %s23
      %26 = dma.hbm_to_vmem [thread:$0]  %s0, 128, %s24, [#allocation3]
    $region5: #{tpu_custom_call.1} parent=1 // pred_fallthru
      _
    // Predicated region
    $region6: #{tpu_custom_call.1} parent=1 // pred_check
      _
    $region7: #{tpu_custom_call.1} parent=1 // pred_check_branch
      %28 = sbr.rel (0) target = $region9
    $region8: #{tpu_custom_call.1} parent=1 // pred_region
      _
    $region9: #{tpu_custom_call.1} parent=1 // pred_fallthru
      _
    // Predicated region
    $region10: #{tpu_custom_call.1} parent=1 // pred_check
      _
    $region11: #{tpu_custom_call.1} parent=1 // pred_check_branch
      %30 = sbr.rel (0) target = $region13
    $region12: #{tpu_custom_call.1} parent=1 // pred_region
      _
    $region13: #{tpu_custom_call.1} parent=1 // pred_fallthru
      _
    // Predicated region
    $region14: #{tpu_custom_call.1} parent=1 // pred_check
      _
    $region15: #{tpu_custom_call.1} parent=1 // pred_check_branch
      %32 = sbr.rel (0) target = $region17
    $region16: #{tpu_custom_call.1} parent=1 // pred_region
      _
    $region17: #{tpu_custom_call.1} parent=1 // pred_fallthru
      _
    // Predicated region
    $region18: #{tpu_custom_call.1} parent=1 // pred_check
      _
    $region19: #{tpu_custom_call.1} parent=1 // pred_check_branch
      %34 = sbr.rel (0) target = $region21
    $region20: #{tpu_custom_call.1} parent=1 // pred_region
      _
    $region21: #{tpu_custom_call.1} parent=1 // pred_fallthru
      _
    // Predicated region
    $region22: #{tpu_custom_call.1} parent=1 // pred_check
      _
    $region23: #{tpu_custom_call.1} parent=1 // pred_check_branch
      %36 = sbr.rel (0) target = $region25
    $region24: #{tpu_custom_call.1} parent=1 // pred_region
      %s38 = ssub.s32 2048, 2048
      %39 = vsyncadd [#allocation6], %s38
      %s40 = sshll.u32 [#allocation5], 4
      %s41 = int_to_ptr.vmem [resolvable:$true] %s40
      %46 = dma.hbm_to_vmem [thread:$0]  %s5, 2048, %s41, [#allocation6], 128, 128, 8
    $region25: #{tpu_custom_call.1} parent=1 // pred_fallthru
      _
    // Predicated region
    $region26: #{tpu_custom_call.1} parent=1 // pred_check
      _
    $region27: #{tpu_custom_call.1} parent=1 // pred_check_branch
      %48 = sbr.rel (0) target = $region29
    $region28: #{tpu_custom_call.1} parent=1 // pred_region
      _
    $region29: #{tpu_custom_call.1} parent=1 // pred_fallthru
      _
    // Predicated region
    $region30: #{tpu_custom_call.1} parent=1 // pred_check
      _
    $region31: #{tpu_custom_call.1} parent=1 // pred_check_branch
      %50 = sbr.rel (0) target = $region33
    $region32: #{tpu_custom_call.1} parent=1 // pred_region
      _
    $region33: #{tpu_custom_call.1} parent=1 // pred_fallthru
      _
    // Predicated region
    $region34: #{tpu_custom_call.1} parent=1 // pred_check
      _
    $region35: #{tpu_custom_call.1} parent=1 // pred_check_branch
      %52 = sbr.rel (0) target = $region37
    $region36: #{tpu_custom_call.1} parent=1 // pred_region
      _
    $region37: #{tpu_custom_call.1} parent=1 // pred_fallthru
      _
    // Predicated region
    $region38: #{tpu_custom_call.1} parent=1 // pred_check
      _
    $region39: #{tpu_custom_call.1} parent=1 // pred_check_branch
      %54 = sbr.rel (0) target = $region41
    $region40: #{tpu_custom_call.1} parent=1 // pred_region
      %55 = dma.done [#allocation3], 128
    $region41: #{tpu_custom_call.1} parent=1 // pred_fallthru
      _
    // Predicated region
    $region42: #{tpu_custom_call.1} parent=1 // pred_check
      _
    $region43: #{tpu_custom_call.1} parent=1 // pred_check_branch
      %57 = sbr.rel (0) target = $region45
    $region44: #{tpu_custom_call.1} parent=1 // pred_region
      %58 = dma.done [#allocation6], 2048
    $region45: #{tpu_custom_call.1} parent=1 // pred_fallthru
      _
    %v59 = vld [vmem:[#allocation2] sm:$0xff]
    %v60 = vld [vmem:[%s1] sm:$0xff]
    %v61 = vld [vmem:[%s1 + $0x8] sm:$0xff]
    %v62 = vld [vmem:[%s1 + $0x10] sm:$0xff]
    %v63 = vld [vmem:[%s1 + $0x18] sm:$0xff]
    %v64 = vld [vmem:[%s2] sm:$0x1]
    %v66 = vlaneseq
    %v67 = vshrl.u32 %v66, 7
    %v68 = vsub.s32 0, %v67
    %v69 = vrot.slane %v64, %v68
    %vm71 = vcmask 261120
    %v73 = vsel %vm71, %v59, 0
    %75 = vmatprep.subr.mxu0 0.0
    %76 = vmatpush1.msra.mxu0 0.0
    %77 = vmatprep.subr.mxu0 0.0
    %78 = vmatpush1.msra.mxu0 0.0
    %79 = vmatprep.subr.mxu0 0.0
    %80 = vmatpush1.msra.mxu0 0.0
    %81 = vmatprep.subr.mxu0 0.0
    %82 = vmatpush1.msra.mxu0 0.0
    %83 = vmatprep.subr.mxu0 0.0
    %84 = vmatpush1.msra.mxu0 0.0
    %85 = vmatprep.subr.mxu0 0.0
    %86 = vmatpush1.msra.mxu0 0.0
    %87 = vmatprep.subr.mxu0 0.0
    %88 = vmatpush1.msra.mxu0 0.0
    %89 = vmatprep.subr.mxu0 0.0
    %90 = vmatpush1.msra.mxu0 0.0
    %91 = vmatprep.subr.mxu0 0.0
    %92 = vmatpush1.msra.mxu0 0.0
    %93 = vmatprep.subr.mxu0 0.0
    %94 = vmatpush1.msra.mxu0 0.0
    %95 = vmatprep.subr.mxu0 0.0
    %96 = vmatpush1.msra.mxu0 0.0
    %97 = vmatprep.subr.mxu0 0.0
    %98 = vmatpush1.msra.mxu0 0.0
    %99 = vmatprep.subr.mxu0 0.0
    %100 = vmatpush1.msra.mxu0 %v63
    %101 = vmatprep.subr.mxu0 0.0
    %102 = vmatpush1.msra.mxu0 %v62
    %103 = vmatprep.subr.mxu0 0.0
    %104 = vmatpush1.msra.mxu0 %v61
    %105 = vmatprep.subr.mxu0 0.0
    %106 = vmatpush1.msra.mxu0 %v60
    %107 = vmatprep.subr.mxu0 0.0
    %108 = vmatpush2.msra.mxu0 0.0
    %109 = vmatprep.subr.mxu0 0.0
    %110 = vmatpush2.msra.mxu0 0.0
    %111 = vmatprep.subr.mxu0 0.0
    %112 = vmatpush2.msra.mxu0 0.0
    %113 = vmatprep.subr.mxu0 0.0
    %114 = vmatpush2.msra.mxu0 0.0
    %115 = vmatprep.subr.mxu0 0.0
    %116 = vmatpush2.msra.mxu0 0.0
    %117 = vmatprep.subr.mxu0 0.0
    %118 = vmatpush2.msra.mxu0 0.0
    %119 = vmatprep.subr.mxu0 0.0
    %120 = vmatpush2.msra.mxu0 0.0
    %121 = vmatprep.subr.mxu0 0.0
    %122 = vmatpush2.msra.mxu0 0.0
    %123 = vmatprep.subr.mxu0 0.0
    %124 = vmatpush2.msra.mxu0 0.0
    %125 = vmatprep.subr.mxu0 0.0
    %126 = vmatpush2.msra.mxu0 0.0
    %127 = vmatprep.subr.mxu0 0.0
    %128 = vmatpush2.msra.mxu0 0.0
    %129 = vmatprep.subr.mxu0 0.0
    %130 = vmatpush2.msra.mxu0 0.0
    %131 = vmatprep.subr.mxu0 0.0
    %132 = vmatpush2.msra.mxu0 0.0
    %133 = vmatprep.subr.mxu0 0.0
    %134 = vmatpush2.msra.mxu0 0.0
    %135 = vmatprep.subr.mxu0 0.0
    %136 = vmatpush2.msra.mxu0 0.0
    %137 = vmatprep.subr.mxu0 0.0
    %138 = vmatpush2.msra.mxu0 0.0
    %139 = vmatprep.mubr.f32.mxu0 0.0
    %140 = vmatmul.mubr.f32.gmra.mxu0 %v73
    %v141 = vpop.f32.mrf.mxu0
    %v142 = vadd.f32 %v69, %v141
    %v143 = vpop.f32.mrf.mxu0
    %144 = vdwg.mxu0
    %v145 = vmul.f32 %v142, 0.5
    %v146 = vtanh.pop %v145
    %v147 = vmul.f32 %v146, 0.5
    %v148 = vadd.f32 %v147, 0.5
    %v149 = vld [vmem:[%s3] sm:$0xff]
    %v150 = vld [vmem:[%s3 + $0x8] sm:$0xff]
    %v151 = vld [vmem:[%s3 + $0x10] sm:$0xff]
    %v152 = vld [vmem:[%s3 + $0x18] sm:$0xff]
    %v153 = vld [vmem:[%s3 + $0x20] sm:$0xff]
    %v154 = vld [vmem:[%s3 + $0x28] sm:$0xff]
    %v155 = vld [vmem:[%s3 + $0x30] sm:$0xff]
    %v156 = vld [vmem:[%s3 + $0x38] sm:$0xff]
    %v157 = vld [vmem:[%s3 + $0x40] sm:$0xff]
    %v158 = vld [vmem:[%s3 + $0x48] sm:$0xff]
    %v159 = vld [vmem:[%s3 + $0x50] sm:$0xff]
    %v160 = vld [vmem:[%s3 + $0x58] sm:$0xff]
    %v161 = vld [vmem:[%s3 + $0x60] sm:$0xff]
    %v162 = vld [vmem:[%s3 + $0x68] sm:$0xff]
    %v163 = vld [vmem:[%s3 + $0x70] sm:$0xff]
    %v164 = vld [vmem:[%s3 + $0x78] sm:$0xff]
    %v165 = vld [vmem:[%s4] sm:$0x1]
    %v167 = vlaneseq
    %v168 = vshrl.u32 %v167, 7
    %v169 = vsub.s32 0, %v168
    %v170 = vrot.slane %v165, %v169
    %172 = vmatprep.subr.mxu0 0.0
    %173 = vmatpush1.msra.mxu0 %v164
    %174 = vmatprep.subr.mxu0 0.0
    %175 = vmatpush1.msra.mxu0 %v163
    %176 = vmatprep.subr.mxu0 0.0
    %177 = vmatpush1.msra.mxu0 %v162
    %178 = vmatprep.subr.mxu0 0.0
    %179 = vmatpush1.msra.mxu0 %v161
    %180 = vmatprep.subr.mxu0 0.0
    %181 = vmatpush1.msra.mxu0 %v160
    %182 = vmatprep.subr.mxu0 0.0
    %183 = vmatpush1.msra.mxu0 %v159
    %184 = vmatprep.subr.mxu0 0.0
    %185 = vmatpush1.msra.mxu0 %v158
    %186 = vmatprep.subr.mxu0 0.0
    %187 = vmatpush1.msra.mxu0 %v157
    %188 = vmatprep.subr.mxu0 0.0
    %189 = vmatpush1.msra.mxu0 %v156
    %190 = vmatprep.subr.mxu0 0.0
    %191 = vmatpush1.msra.mxu0 %v155
    %192 = vmatprep.subr.mxu0 0.0
    %193 = vmatpush1.msra.mxu0 %v154
    %194 = vmatprep.subr.mxu0 0.0
    %195 = vmatpush1.msra.mxu0 %v153
    %196 = vmatprep.subr.mxu0 0.0
    %197 = vmatpush1.msra.mxu0 %v152
    %198 = vmatprep.subr.mxu0 0.0
    %199 = vmatpush1.msra.mxu0 %v151
    %200 = vmatprep.subr.mxu0 0.0
    %201 = vmatpush1.msra.mxu0 %v150
    %202 = vmatprep.subr.mxu0 0.0
    %203 = vmatpush1.msra.mxu0 %v149
    %204 = vmatprep.subr.mxu0 0.0
    %205 = vmatpush2.msra.mxu0 0.0
    %206 = vmatprep.subr.mxu0 0.0
    %207 = vmatpush2.msra.mxu0 0.0
    %208 = vmatprep.subr.mxu0 0.0
    %209 = vmatpush2.msra.mxu0 0.0
    %210 = vmatprep.subr.mxu0 0.0
    %211 = vmatpush2.msra.mxu0 0.0
    %212 = vmatprep.subr.mxu0 0.0
    %213 = vmatpush2.msra.mxu0 0.0
    %214 = vmatprep.subr.mxu0 0.0
    %215 = vmatpush2.msra.mxu0 0.0
    %216 = vmatprep.subr.mxu0 0.0
    %217 = vmatpush2.msra.mxu0 0.0
    %218 = vmatprep.subr.mxu0 0.0
    %219 = vmatpush2.msra.mxu0 0.0
    %220 = vmatprep.subr.mxu0 0.0
    %221 = vmatpush2.msra.mxu0 0.0
    %222 = vmatprep.subr.mxu0 0.0
    %223 = vmatpush2.msra.mxu0 0.0
    %224 = vmatprep.subr.mxu0 0.0
    %225 = vmatpush2.msra.mxu0 0.0
    %226 = vmatprep.subr.mxu0 0.0
    %227 = vmatpush2.msra.mxu0 0.0
    %228 = vmatprep.subr.mxu0 0.0
    %229 = vmatpush2.msra.mxu0 0.0
    %230 = vmatprep.subr.mxu0 0.0
    %231 = vmatpush2.msra.mxu0 0.0
    %232 = vmatprep.subr.mxu0 0.0
    %233 = vmatpush2.msra.mxu0 0.0
    %234 = vmatprep.subr.mxu0 0.0
    %235 = vmatpush2.msra.mxu0 0.0
    %236 = vmatprep.mubr.f32.mxu0 0.0
    %237 = vmatmul.mubr.f32.gmra.mxu0 %v148
    %v238 = vpop.f32.mrf.mxu0
    %v239 = vadd.f32 %v170, %v238
    %v240 = vpop.f32.mrf.mxu0
    %241 = vdwg.mxu0
    %v242 = vmul.f32 %v239, 0.5
    %v243 = vtanh.pop %v242
    %v244 = vmul.f32 %v243, 0.5
    %v245 = vadd.f32 %v244, 0.5
    %v246 = vld [vmem:[#allocation5] sm:$0xff]
    %v247 = vld [vmem:[#allocation5 + $0x8] sm:$0xff]
    %v248 = vld [vmem:[#allocation5 + $0x10] sm:$0xff]
    %v249 = vld [vmem:[#allocation5 + $0x18] sm:$0xff]
    %v250 = vld [vmem:[#allocation5 + $0x20] sm:$0xff]
    %v251 = vld [vmem:[#allocation5 + $0x28] sm:$0xff]
    %v252 = vld [vmem:[#allocation5 + $0x30] sm:$0xff]
    %v253 = vld [vmem:[#allocation5 + $0x38] sm:$0xff]
    %v254 = vld [vmem:[#allocation5 + $0x40] sm:$0xff]
    %v255 = vld [vmem:[#allocation5 + $0x48] sm:$0xff]
    %v256 = vld [vmem:[#allocation5 + $0x50] sm:$0xff]
    %v257 = vld [vmem:[#allocation5 + $0x58] sm:$0xff]
    %v258 = vld [vmem:[#allocation5 + $0x60] sm:$0xff]
    %v259 = vld [vmem:[#allocation5 + $0x68] sm:$0xff]
    %v260 = vld [vmem:[#allocation5 + $0x70] sm:$0xff]
    %v261 = vld [vmem:[#allocation5 + $0x78] sm:$0xff]
    %v262 = vld [vmem:[%s6] sm:$0x1]
    %v264 = vlaneseq
    %v265 = vshrl.u32 %v264, 7
    %v266 = vsub.s32 0, %v265
    %v267 = vrot.slane %v262, %v266
    %269 = vmatprep.subr.mxu0 0.0
    %270 = vmatpush1.msra.mxu0 %v261
    %271 = vmatprep.subr.mxu0 0.0
    %272 = vmatpush1.msra.mxu0 %v260
    %273 = vmatprep.subr.mxu0 0.0
    %274 = vmatpush1.msra.mxu0 %v259
    %275 = vmatprep.subr.mxu0 0.0
    %276 = vmatpush1.msra.mxu0 %v258
    %277 = vmatprep.subr.mxu0 0.0
    %278 = vmatpush1.msra.mxu0 %v257
    %279 = vmatprep.subr.mxu0 0.0
    %280 = vmatpush1.msra.mxu0 %v256
    %281 = vmatprep.subr.mxu0 0.0
    %282 = vmatpush1.msra.mxu0 %v255
    %283 = vmatprep.subr.mxu0 0.0
    %284 = vmatpush1.msra.mxu0 %v254
    %285 = vmatprep.subr.mxu0 0.0
    %286 = vmatpush1.msra.mxu0 %v253
    %287 = vmatprep.subr.mxu0 0.0
    %288 = vmatpush1.msra.mxu0 %v252
    %289 = vmatprep.subr.mxu0 0.0
    %290 = vmatpush1.msra.mxu0 %v251
    %291 = vmatprep.subr.mxu0 0.0
    %292 = vmatpush1.msra.mxu0 %v250
    %293 = vmatprep.subr.mxu0 0.0
    %294 = vmatpush1.msra.mxu0 %v249
    %295 = vmatprep.subr.mxu0 0.0
    %296 = vmatpush1.msra.mxu0 %v248
    %297 = vmatprep.subr.mxu0 0.0
    %298 = vmatpush1.msra.mxu0 %v247
    %299 = vmatprep.subr.mxu0 0.0
    %300 = vmatpush1.msra.mxu0 %v246
    %301 = vmatprep.subr.mxu0 0.0
    %302 = vmatpush2.msra.mxu0 0.0
    %303 = vmatprep.subr.mxu0 0.0
    %304 = vmatpush2.msra.mxu0 0.0
    %305 = vmatprep.subr.mxu0 0.0
    %306 = vmatpush2.msra.mxu0 0.0
    %307 = vmatprep.subr.mxu0 0.0
    %308 = vmatpush2.msra.mxu0 0.0
    %309 = vmatprep.subr.mxu0 0.0
    %310 = vmatpush2.msra.mxu0 0.0
    %311 = vmatprep.subr.mxu0 0.0
    %312 = vmatpush2.msra.mxu0 0.0
    %313 = vmatprep.subr.mxu0 0.0
    %314 = vmatpush2.msra.mxu0 0.0
    %315 = vmatprep.subr.mxu0 0.0
    %316 = vmatpush2.msra.mxu0 0.0
    %317 = vmatprep.subr.mxu0 0.0
    %318 = vmatpush2.msra.mxu0 0.0
    %319 = vmatprep.subr.mxu0 0.0
    %320 = vmatpush2.msra.mxu0 0.0
    %321 = vmatprep.subr.mxu0 0.0
    %322 = vmatpush2.msra.mxu0 0.0
    %323 = vmatprep.subr.mxu0 0.0
    %324 = vmatpush2.msra.mxu0 0.0
    %325 = vmatprep.subr.mxu0 0.0
    %326 = vmatpush2.msra.mxu0 0.0
    %327 = vmatprep.subr.mxu0 0.0
    %328 = vmatpush2.msra.mxu0 0.0
    %329 = vmatprep.subr.mxu0 0.0
    %330 = vmatpush2.msra.mxu0 0.0
    %331 = vmatprep.subr.mxu0 0.0
    %332 = vmatpush2.msra.mxu0 0.0
    %333 = vmatprep.mubr.f32.mxu0 0.0
    %334 = vmatmul.mubr.f32.gmra.mxu0 %v245
    %v335 = vpop.f32.mrf.mxu0
    %v336 = vadd.f32 %v267, %v335
    %v337 = vpop.f32.mrf.mxu0
    %338 = vdwg.mxu0
    %v339 = vmul.f32 %v336, 0.5
    %v340 = vtanh.pop %v339
    %v341 = vmul.f32 %v340, 0.5
    %v342 = vadd.f32 %v341, 0.5
    %v343 = vld [vmem:[%s7] sm:$0xff]
    %v344 = vld [vmem:[%s7 + $0x8] sm:$0xff]
    %v345 = vld [vmem:[%s7 + $0x10] sm:$0xff]
    %v346 = vld [vmem:[%s7 + $0x18] sm:$0xff]
    %v347 = vld [vmem:[%s7 + $0x20] sm:$0xff]
    %v348 = vld [vmem:[%s7 + $0x28] sm:$0xff]
    %v349 = vld [vmem:[%s7 + $0x30] sm:$0xff]
    %v350 = vld [vmem:[%s7 + $0x38] sm:$0xff]
    %v351 = vld [vmem:[%s7 + $0x40] sm:$0xff]
    %v352 = vld [vmem:[%s7 + $0x48] sm:$0xff]
    %v353 = vld [vmem:[%s7 + $0x50] sm:$0xff]
    %v354 = vld [vmem:[%s7 + $0x58] sm:$0xff]
    %v355 = vld [vmem:[%s7 + $0x60] sm:$0xff]
    %v356 = vld [vmem:[%s7 + $0x68] sm:$0xff]
    %v357 = vld [vmem:[%s7 + $0x70] sm:$0xff]
    %v358 = vld [vmem:[%s7 + $0x78] sm:$0xff]
    %v359 = vld [vmem:[%s8] sm:$0x1]
    %v361 = vlaneseq
    %v362 = vshrl.u32 %v361, 7
    %v363 = vsub.s32 0, %v362
    %v364 = vrot.slane %v359, %v363
    %366 = vmatprep.subr.mxu0 0.0
    %367 = vmatpush1.msra.mxu0 %v358
    %368 = vmatprep.subr.mxu0 0.0
    %369 = vmatpush1.msra.mxu0 %v357
    %370 = vmatprep.subr.mxu0 0.0
    %371 = vmatpush1.msra.mxu0 %v356
    %372 = vmatprep.subr.mxu0 0.0
    %373 = vmatpush1.msra.mxu0 %v355
    %374 = vmatprep.subr.mxu0 0.0
    %375 = vmatpush1.msra.mxu0 %v354
    %376 = vmatprep.subr.mxu0 0.0
    %377 = vmatpush1.msra.mxu0 %v353
    %378 = vmatprep.subr.mxu0 0.0
    %379 = vmatpush1.msra.mxu0 %v352
    %380 = vmatprep.subr.mxu0 0.0
    %381 = vmatpush1.msra.mxu0 %v351
    %382 = vmatprep.subr.mxu0 0.0
    %383 = vmatpush1.msra.mxu0 %v350
    %384 = vmatprep.subr.mxu0 0.0
    %385 = vmatpush1.msra.mxu0 %v349
    %386 = vmatprep.subr.mxu0 0.0
    %387 = vmatpush1.msra.mxu0 %v348
    %388 = vmatprep.subr.mxu0 0.0
    %389 = vmatpush1.msra.mxu0 %v347
    %390 = vmatprep.subr.mxu0 0.0
    %391 = vmatpush1.msra.mxu0 %v346
    %392 = vmatprep.subr.mxu0 0.0
    %393 = vmatpush1.msra.mxu0 %v345
    %394 = vmatprep.subr.mxu0 0.0
    %395 = vmatpush1.msra.mxu0 %v344
    %396 = vmatprep.subr.mxu0 0.0
    %397 = vmatpush1.msra.mxu0 %v343
    %398 = vmatprep.subr.mxu0 0.0
    %399 = vmatpush2.msra.mxu0 0.0
    %400 = vmatprep.subr.mxu0 0.0
    %401 = vmatpush2.msra.mxu0 0.0
    %402 = vmatprep.subr.mxu0 0.0
    %403 = vmatpush2.msra.mxu0 0.0
    %404 = vmatprep.subr.mxu0 0.0
    %405 = vmatpush2.msra.mxu0 0.0
    %406 = vmatprep.subr.mxu0 0.0
    %407 = vmatpush2.msra.mxu0 0.0
    %408 = vmatprep.subr.mxu0 0.0
    %409 = vmatpush2.msra.mxu0 0.0
    %410 = vmatprep.subr.mxu0 0.0
    %411 = vmatpush2.msra.mxu0 0.0
    %412 = vmatprep.subr.mxu0 0.0
    %413 = vmatpush2.msra.mxu0 0.0
    %414 = vmatprep.subr.mxu0 0.0
    %415 = vmatpush2.msra.mxu0 0.0
    %416 = vmatprep.subr.mxu0 0.0
    %417 = vmatpush2.msra.mxu0 0.0
    %418 = vmatprep.subr.mxu0 0.0
    %419 = vmatpush2.msra.mxu0 0.0
    %420 = vmatprep.subr.mxu0 0.0
    %421 = vmatpush2.msra.mxu0 0.0
    %422 = vmatprep.subr.mxu0 0.0
    %423 = vmatpush2.msra.mxu0 0.0
    %424 = vmatprep.subr.mxu0 0.0
    %425 = vmatpush2.msra.mxu0 0.0
    %426 = vmatprep.subr.mxu0 0.0
    %427 = vmatpush2.msra.mxu0 0.0
    %428 = vmatprep.subr.mxu0 0.0
    %429 = vmatpush2.msra.mxu0 0.0
    %430 = vmatprep.mubr.f32.mxu0 0.0
    %431 = vmatmul.mubr.f32.gmra.mxu0 %v342
    %v432 = vpop.f32.mrf.mxu0
    %v433 = vadd.f32 %v364, %v432
    %v434 = vpop.f32.mrf.mxu0
    %435 = vdwg.mxu0
    %v436 = vmul.f32 %v433, 0.5
    %v437 = vtanh.pop %v436
    %v438 = vmul.f32 %v437, 0.5
    %v439 = vadd.f32 %v438, 0.5
    %440 = vst.msk [vmem:[#allocation7] sm:$0xff] %vm71, %v439
    // Predicated region
    $region46: #{tpu_custom_call.1} parent=1 // pred_check
      _
    $region47: #{tpu_custom_call.1} parent=1 // pred_check_branch
      %442 = sbr.rel (0) target = $region49
    $region48: #{tpu_custom_call.1} parent=1 // pred_region
      %s444 = ssub.s32 128, 128
      %445 = vsyncadd [#allocation4], %s444
      %s447 = sshll.u32 [#allocation7], 4
      %s448 = int_to_ptr.vmem [resolvable:$true] %s447
      %450 = dma.vmem_to_hbm [thread:$0]  %s448, 128, %s9, [#allocation4]
    $region49: #{tpu_custom_call.1} parent=1 // pred_fallthru
      _
    // Predicated region
    $region50: #{tpu_custom_call.1} parent=1 // pred_check
      _
    $region51: #{tpu_custom_call.1} parent=1 // pred_check_branch
      %452 = sbr.rel (0) target = $region53
    $region52: #{tpu_custom_call.1} parent=1 // pred_region
      %453 = dma.done [#allocation4], 128
    $region53: #{tpu_custom_call.1} parent=1 // pred_fallthru
      _
    %454 = vsyncpa [#allocation3], 1
    %455 = vsyncpa [#allocation6], 1
    %456 = vsyncpa [#allocation4], 1

</llo_original>
